<compile_context>
chip_gen: v5e
topology: v5e:2x2
jax: 0.10.0
libtpu: 0.0.40
codegen_flags: <defaults>
</compile_context>

<pallas_src>
import functools

import jax
import jax.numpy as jnp
from jax.experimental import pallas as pl
from jax.experimental.pallas import tpu as pltpu

_LANES = 128            # lane width of a vreg
_SUBLANES = 8           # f32 sublane tiling
_MAX_BLOCK_ROWS = 1024  # 1024 x 128 x 4 B = 512 KiB per f32 buffer
_TARGET_GRID = 4        # keep >= ~4 blocks so v7x's 2 TCs both get work
_PALLAS_MIN_BONDS = 2048  # below this, plain JAX is faster than kernel launch


def _round_up(x, m):
    return -(-x // m) * m


def _choose_block_rows(rows):
    """Pick the pipelined block height (multiple of 8, <= 1024 rows)."""
    if rows <= _SUBLANES:
        return rows  # single full-array block
    target = pl.cdiv(rows, _TARGET_GRID)
    return min(_MAX_BLOCK_ROWS, max(_SUBLANES, _round_up(target, _SUBLANES)))


def _default_strategy():
    """v5e (HBM-bound) -> in-kernel table; v6e/v7x (VALU-bound) -> gather."""
    try:
        kind = jax.devices()[0].device_kind.lower()
    except Exception:
        return "gather"
    if ("v5 lite" in kind or "v5e" in kind or "v4" in kind
            or "v3" in kind or "v2" in kind):
        return "table"
    return "gather"


# ---------------------------------------------------------------------------
# Kernels
# ---------------------------------------------------------------------------

def _harmonic_elem_kernel(k_ref, r0_ref, dist_ref, out_ref):
    """Purely elementwise: k/r0 already gathered per bond (v6e/v7x path)."""
    dr = dist_ref[...] - r0_ref[...]
    out_ref[...] = 0.5 * k_ref[...] * dr * dr


def _harmonic_table_kernel(k_tab_ref, r0_tab_ref, code_ref, dist_ref, out_ref,
                           *, num_pairs: int):
    """Fused-code path (v5e): in-kernel lookup from 1D SMEM tables.

    k_tab_ref, r0_tab_ref : (T*T,) float32 in SMEM (flattened -> no SMEM pad)
    code_ref              : (block_rows, 128) int32, code = ti*T + tj
    dist_ref / out_ref    : (block_rows, 128) float32
    """
    code = code_ref[...]
    d = dist_ref[...]
    k_b = jnp.zeros_like(d)
    r0_b = jnp.zeros_like(d)
    # Static unroll over the small parameter table: scalar SMEM splats + selects.
    for p in range(num_pairs):
        m = code == p
        k_b = jnp.where(m, k_tab_ref[p], k_b)
        r0_b = jnp.where(m, r0_tab_ref[p], r0_b)
    # TODO(synk): for T*T >~ 32 replace the select chain with a one-hot x
    # (T*T, 2) MXU matmul, or narrow the code stream to int16.
    dr = d - r0_b
    out_ref[...] = 0.5 * k_b * dr * dr


# ---------------------------------------------------------------------------
# Wrapper
# ---------------------------------------------------------------------------

@functools.partial(jax.jit, static_argnames=("strategy", "min_bonds_for_pallas"))
def harmonic_bond_energy(typ, bonds_i, bonds_j, bond_dist, r0_table, k_table,
                         *, strategy="auto",
                         min_bonds_for_pallas=_PALLAS_MIN_BONDS):
    """Per-bond harmonic energy, shape (num_bonds,), float32."""
    num_types = int(k_table.shape[0])
    num_bonds = int(bond_dist.shape[0])

    k_table = k_table.astype(jnp.float32)
    r0_table = r0_table.astype(jnp.float32)
    bond_dist = bond_dist.astype(jnp.float32)
    typ = typ.astype(jnp.int32)

    if strategy == "auto":
        strategy = _default_strategy()

    # Tiny-workload fallback: kernel-launch + DMA setup costs dominate.
    if num_bonds < min_bonds_for_pallas:
        bt_i = typ[bonds_i]
        bt_j = typ[bonds_j]
        return (0.5 * k_table[bt_i, bt_j]
                * jnp.square(bond_dist - r0_table[bt_i, bt_j]))

    # Lay bonds out as (rows, 128); only the lane dimension is padded
    # (<= 127 dummy bonds).  The grid uses a ragged last block, so no
    # whole-block padding pass over the data is needed.
    rows = pl.cdiv(num_bonds, _LANES)
    nb_pad = rows * _LANES
    pad = nb_pad - num_bonds
    block_rows = _choose_block_rows(rows)
    grid = (pl.cdiv(rows, block_rows),)

    # Pad the (cheap) index arrays before the gather so the padded-length
    # gathered arrays come straight out of one fused gather; type 0 is a valid
    # index and the tail energies are sliced off below.
    bi = jnp.pad(bonds_i.astype(jnp.int32), (0, pad))
    bj = jnp.pad(bonds_j.astype(jnp.int32), (0, pad))
    bt_i = typ[bi]
    bt_j = typ[bj]
    dist2d = jnp.pad(bond_dist, (0, pad)).reshape(rows, _LANES)
    # TODO(synk): if callers allocate bond arrays rounded up to a multiple of
    # 128, the pads above and the epilogue slice below vanish entirely.

    blk = pl.BlockSpec((block_rows, _LANES), lambda i: (i, 0))
    params = pltpu.CompilerParams(dimension_semantics=("parallel",))

    if strategy == "gather":
        # Wrapper-side gather of per-bond parameters -> purely elementwise
        # kernel (no VALU select chain).  Preferred on v6e/v7x.
        k_b = k_table[bt_i, bt_j].reshape(rows, _LANES)
        r0_b = r0_table[bt_i, bt_j].reshape(rows, _LANES)
        out = pl.pallas_call(
            _harmonic_elem_kernel,
            out_shape=jax.ShapeDtypeStruct((rows, _LANES), jnp.float32),
            grid=grid,
            in_specs=[blk, blk, blk],
            out_specs=blk,
            compiler_params=params,
        )(k_b, r0_b, dist2d)
    else:  # "table": fused type-code + in-kernel SMEM lookup (v5e, HBM-bound)
        code2d = (bt_i * num_types + bt_j).reshape(rows, _LANES)
        kernel = functools.partial(_harmonic_table_kernel,
                                   num_pairs=num_types * num_types)
        out = pl.pallas_call(
            kernel,
            out_shape=jax.ShapeDtypeStruct((rows, _LANES), jnp.float32),
            grid=grid,
            in_specs=[
                pl.BlockSpec(memory_space=pltpu.MemorySpace.SMEM),  # k (T*T,)
                pl.BlockSpec(memory_space=pltpu.MemorySpace.SMEM),  # r0 (T*T,)
                blk,   # code
                blk,   # dist
            ],
            out_specs=blk,
            compiler_params=params,
        )(k_table.reshape(-1), r0_table.reshape(-1), code2d, dist2d)

    res = out.reshape(-1)
    if pad:
        # TODO(synk): callers that immediately reduce (sum) the energies should
        # consume the padded (rows, 128) buffer directly and skip this copy.
        res = res[:num_bonds]
    return res


if __name__ == "__main__":
    key = jax.random.PRNGKey(0)
    k1, k2, k3, k4, k5, k6 = jax.random.split(key, 6)

    num_atoms = 500
    num_bonds = 6000        # not a multiple of 128 -> exercises ragged tail
    num_types = 4

    # Deterministic synthetic parameters (module __init__ takes r0, k tables
    # indexed by (type_i, type_j)); symmetric like real force fields.
    r0_raw = jax.random.uniform(k1, (num_types, num_types),
                                minval=1.0, maxval=2.0, dtype=jnp.float32)
    k_raw = jax.random.uniform(k2, (num_types, num_types),
                               minval=100.0, maxval=500.0, dtype=jnp.float32)
    r0_table = 0.5 * (r0_raw + r0_raw.T)
    k_table = 0.5 * (k_raw + k_raw.T)

    # Synthetic "inputs" dict fields.
    typ = jax.random.randint(k3, (num_atoms,), 0, num_types, dtype=jnp.int32)
    bonds_i = jax.random.randint(k4, (num_bonds,), 0, num_atoms, dtype=jnp.int32)
    bonds_j = jax.random.randint(k5, (num_bonds,), 0, num_atoms, dtype=jnp.int32)
    bond_dist = jax.random.uniform(k6, (num_bonds,), minval=0.8, maxval=2.2,
                                   dtype=jnp.float32)

    # Pure-JAX reference (same semantics as the PyTorch forward).
    bt_i = typ[bonds_i]
    bt_j = typ[bonds_j]
    ref = 0.5 * k_table[bt_i, bt_j] * jnp.square(bond_dist - r0_table[bt_i, bt_j])

    # 1) Auto strategy (gather on v6e/v7x, table on v5e and older).
    e_auto = jax.block_until_ready(
        harmonic_bond_energy(typ, bonds_i, bonds_j, bond_dist,
                             r0_table, k_table))
    assert e_auto.shape == (num_bonds,)
    assert jnp.allclose(e_auto, ref, rtol=1e-6, atol=1e-6)

    # 2) Explicitly exercise both Pallas paths (both must compile + match).
    e_gather = jax.block_until_ready(
        harmonic_bond_energy(typ, bonds_i, bonds_j, bond_dist,
                             r0_table, k_table, strategy="gather"))
    e_table = jax.block_until_ready(
        harmonic_bond_energy(typ, bonds_i, bonds_j, bond_dist,
                             r0_table, k_table, strategy="table"))
    assert jnp.allclose(e_gather, ref, rtol=1e-6, atol=1e-6)
    assert jnp.allclose(e_table, ref, rtol=1e-6, atol=1e-6)

    # 3) Tiny workload takes the plain-JAX fallback (per review).
    n_small = 100
    e_small = jax.block_until_ready(
        harmonic_bond_energy(typ, bonds_i[:n_small], bonds_j[:n_small],
                             bond_dist[:n_small], r0_table, k_table))
    assert jnp.allclose(e_small, ref[:n_small], rtol=1e-6, atol=1e-6)

    print("KERNEL_OK")
</pallas_src>

<mosaic_0001>
module attributes {stable_mosaic.version = 11 : i64} {
  func.func @_harmonic_elem_kernel(%arg0: i32, %arg1: memref<16x128xf32, #tpu.memory_space<vmem>>, %arg2: memref<16x128xf32, #tpu.memory_space<vmem>>, %arg3: memref<16x128xf32, #tpu.memory_space<vmem>>, %arg4: memref<16x128xf32, #tpu.memory_space<vmem>>) attributes {dimension_semantics = [#tpu.dimension_semantics<parallel>], iteration_bounds = array<i64: 3>, scalar_prefetch = 0 : i64, scratch_operands = 0 : i64, tpu.core_type = #tpu.core_type<tc>, window_params = [{transform_indices = @transform_0, window_bounds = array<i64: 16, 128>}, {transform_indices = @transform_1, window_bounds = array<i64: 16, 128>}, {transform_indices = @transform_2, window_bounds = array<i64: 16, 128>}, {transform_indices = @transform_3, window_bounds = array<i64: 16, 128>}]} {
    %c0 = arith.constant 0 : index
    %c0_0 = arith.constant 0 : index
    %0 = vector.load %arg3[%c0, %c0_0] : memref<16x128xf32, #tpu.memory_space<vmem>>, vector<16x128xf32>
    %c0_1 = arith.constant 0 : index
    %c0_2 = arith.constant 0 : index
    %1 = vector.load %arg2[%c0_1, %c0_2] : memref<16x128xf32, #tpu.memory_space<vmem>>, vector<16x128xf32>
    %2 = arith.subf %0, %1 : vector<16x128xf32>
    %c0_3 = arith.constant 0 : index
    %c0_4 = arith.constant 0 : index
    %3 = vector.load %arg1[%c0_3, %c0_4] : memref<16x128xf32, #tpu.memory_space<vmem>>, vector<16x128xf32>
    %cst = arith.constant 5.000000e-01 : f32
    %4 = vector.broadcast %cst : f32 to vector<16x128xf32>
    %5 = arith.mulf %4, %3 : vector<16x128xf32>
    %6 = arith.mulf %5, %2 : vector<16x128xf32>
    %7 = arith.mulf %6, %2 : vector<16x128xf32>
    %c0_5 = arith.constant 0 : index
    %c0_6 = arith.constant 0 : index
    %8 = vector.load %arg4[%c0_5, %c0_6] : memref<16x128xf32, #tpu.memory_space<vmem>>, vector<16x128xf32>
    tpu.vector_store %arg4[%c0_5, %c0_6], %7 {strides = array<i32>} : memref<16x128xf32, #tpu.memory_space<vmem>>, vector<16x128xf32>,
    return
  }
  func.func @transform_0(%arg0: i32) -> (i32, i32) {
    %c0_i32 = arith.constant 0 : i32
    %c0_i32_0 = arith.constant 0 : i32
    return %arg0, %c0_i32 : i32, i32
  }
  func.func @transform_1(%arg0: i32) -> (i32, i32) {
    %c0_i32 = arith.constant 0 : i32
    %c0_i32_0 = arith.constant 0 : i32
    return %arg0, %c0_i32 : i32, i32
  }
  func.func @transform_2(%arg0: i32) -> (i32, i32) {
    %c0_i32 = arith.constant 0 : i32
    %c0_i32_0 = arith.constant 0 : i32
    return %arg0, %c0_i32 : i32, i32
  }
  func.func @transform_3(%arg0: i32) -> (i32, i32) {
    %c0_i32 = arith.constant 0 : i32
    %c0_i32_0 = arith.constant 0 : i32
    return %arg0, %c0_i32 : i32, i32
  }
}

</mosaic_0001>

<llo_original>
// kernel: harmonic_bond_energy.1
$region0: #{harmonic_bond_energy.1}
  #allocation0 [shape = 'u32[]', space=smem, size = 0x4, offset = 0x4, fixed_abs, tag = 'smem constant byte address 0x4 - core index']
  #allocation1 [shape = 'u32[72,128]{1,0:T(1,128)}', space=vmem, size = 0x9000, scoped, tag = 'internal scratch']
  %s0 = inlined_call_operand.vmem [shape: f32[47,128], index: 0, kind: input, shape index: {}]
  %s1 = inlined_call_operand.vmem [shape: f32[47,128], index: 1, kind: input, shape index: {}]
  %s2 = inlined_call_operand.vmem [shape: f32[47,128], index: 2, kind: input, shape index: {}]
  %s3 = inlined_call_operand.hbm [shape: f32[47,128], index: 3, kind: output, shape index: {}]
  %s4 = sld [smem:[#allocation0]]
  $region45: #{harmonic_bond_energy.1} parent=0
    _
  %s6 = ssub.s32 1, %s4
  %s7 = scalar_select 0, %s6, %s4
  $region1: #{harmonic_bond_energy.1} parent=0
    #allocation2 [shape = 'u8[16384]{0}', space=vmem, size = 0x4000, scoped, tag = 'output window, operand 0']
    #allocation3 [shape = 's32[2]{0}', space=sflag, size = 0x8, scoped, tag = 'scoped memory for harmonic_bond_energy.1']
    %8 = vsyncpa [#allocation3], 0
    %s9 = scalar_lea.sflag [#allocation3], 1
    %10 = vsyncpa %s9, 0
    loop: start=0, step=1, limit=5
    $region2: #{harmonic_bond_energy.1} parent=1 // loop_pre_header
      _
    $region3: #{harmonic_bond_energy.1} parent=1 // loop_header
      %s12 = sphi 0, %s16
      %p13 = scmp.ge.s32.totalorder %s12, 5
      %s22 = sphi 0, %s24
      %s25 = sphi 0, %s22
      %s26 = sphi 0, %s25
      %s42 = sphi 0, %s26
      %s48 = sphi 0, %s50
      %s51 = sphi 0, %s48
      %s52 = sphi 0, %s51
      %s68 = sphi 0, %s52
      %s74 = sphi 0, %s76
      %s77 = sphi 0, %s74
      %s78 = sphi 0, %s77
      %s94 = sphi 0, %s78
      %s100 = sphi 0, %s102
      %s103 = sphi 0, %s100
      %s104 = sphi 0, %s103
      %s120 = sphi 0, %s104
    $region4: #{harmonic_bond_energy.1} parent=1 // loop_header_branch
      %15 = sbr.rel (%p13) target = $region8
    $region5: #{harmonic_bond_energy.1} parent=1 // loop_body
      %s17 = ssub.s32 %s12, 1
      %s18 = ssub.s32 %s12, 2
      %s19 = sadd.s32 %s12, 1
      %s20 = ssub.s32 %s12, %s19
      %p21 = scmp.eq.s32.totalorder %s20, 0
      %s23 = sadd.s32 %s22, 1
      %s24 = scalar_select %p21, %s22, %s23
      %p27 = pneg %p21
      %p28 = scmp.eq.s32.totalorder %s12, 2
      %p29 = por %p27, %p28
      %p30 = scmp.ne.s32.totalorder %s22, %s25
      %p31 = scmp.eq.s32.totalorder %s12, 0
      %p32 = por %p30, %p31
      %p33 = scmp.ne.s32.totalorder %s22, %s25
      %p34 = scmp.eq.s32.totalorder %s17, 2
      %p35 = por %p33, %p34
      %p36 = scmp.ne.s32.totalorder %s25, %s26
      %p37 = scmp.eq.s32.totalorder %s17, 0
      %p38 = por %p36, %p37
      %p39 = scmp.ne.s32.totalorder %s25, %s26
      %p40 = scmp.eq.s32.totalorder %s18, 2
      %p41 = por %p39, %p40
      %p43 = scmp.ne.s32.totalorder %s26, %s42
      %p44 = scmp.eq.s32.totalorder %s18, 0
      %p45 = por %p43, %p44
      %s46 = ssub.s32 %s12, %s19
      %p47 = scmp.eq.s32.totalorder %s46, 0
      %s49 = sadd.s32 %s48, 1
      %s50 = scalar_select %p47, %s48, %s49
      %p53 = pneg %p47
      %p54 = scmp.eq.s32.totalorder %s12, 2
      %p55 = por %p53, %p54
      %p56 = scmp.ne.s32.totalorder %s48, %s51
      %p57 = scmp.eq.s32.totalorder %s12, 0
      %p58 = por %p56, %p57
      %p59 = scmp.ne.s32.totalorder %s48, %s51
      %p60 = scmp.eq.s32.totalorder %s17, 2
      %p61 = por %p59, %p60
      %p62 = scmp.ne.s32.totalorder %s51, %s52
      %p63 = scmp.eq.s32.totalorder %s17, 0
      %p64 = por %p62, %p63
      %p65 = scmp.ne.s32.totalorder %s51, %s52
      %p66 = scmp.eq.s32.totalorder %s18, 2
      %p67 = por %p65, %p66
      %p69 = scmp.ne.s32.totalorder %s52, %s68
      %p70 = scmp.eq.s32.totalorder %s18, 0
      %p71 = por %p69, %p70
      %s72 = ssub.s32 %s12, %s19
      %p73 = scmp.eq.s32.totalorder %s72, 0
      %s75 = sadd.s32 %s74, 1
      %s76 = scalar_select %p73, %s74, %s75
      %p79 = pneg %p73
      %p80 = scmp.eq.s32.totalorder %s12, 2
      %p81 = por %p79, %p80
      %p82 = scmp.ne.s32.totalorder %s74, %s77
      %p83 = scmp.eq.s32.totalorder %s12, 0
      %p84 = por %p82, %p83
      %p85 = scmp.ne.s32.totalorder %s74, %s77
      %p86 = scmp.eq.s32.totalorder %s17, 2
      %p87 = por %p85, %p86
      %p88 = scmp.ne.s32.totalorder %s77, %s78
      %p89 = scmp.eq.s32.totalorder %s17, 0
      %p90 = por %p88, %p89
      %p91 = scmp.ne.s32.totalorder %s77, %s78
      %p92 = scmp.eq.s32.totalorder %s18, 2
      %p93 = por %p91, %p92
      %p95 = scmp.ne.s32.totalorder %s78, %s94
      %p96 = scmp.eq.s32.totalorder %s18, 0
      %p97 = por %p95, %p96
      %s98 = ssub.s32 %s12, %s19
      %p99 = scmp.eq.s32.totalorder %s98, 0
      %s101 = sadd.s32 %s100, 1
      %s102 = scalar_select %p99, %s100, %s101
      %p105 = pneg %p99
      %p106 = scmp.eq.s32.totalorder %s12, 2
      %p107 = por %p105, %p106
      %p108 = scmp.ne.s32.totalorder %s100, %s103
      %p109 = scmp.eq.s32.totalorder %s12, 0
      %p110 = por %p108, %p109
      %p111 = scmp.ne.s32.totalorder %s100, %s103
      %p112 = scmp.eq.s32.totalorder %s17, 2
      %p113 = por %p111, %p112
      %p114 = scmp.ne.s32.totalorder %s103, %s104
      %p115 = scmp.eq.s32.totalorder %s17, 0
      %p116 = por %p114, %p115
      %p117 = scmp.ne.s32.totalorder %s103, %s104
      %p118 = scmp.eq.s32.totalorder %s18, 2
      %p119 = por %p117, %p118
      %p121 = scmp.ne.s32.totalorder %s104, %s120
      %p122 = scmp.eq.s32.totalorder %s18, 0
      %p123 = por %p121, %p122
      %p124 = scmp.le.s32.totalorder 1, %s12
      %p125 = scmp.lt.s32.totalorder %s12, 4
      %p126 = pnand %p124, %p125
      %p127 = pneg %p126
      // Predicated region
      $region9: #{harmonic_bond_energy.1} parent=5 // pred_check
        _
      $region10: #{harmonic_bond_energy.1} parent=5 // pred_check_branch
        %129 = sbr.rel (%p126) target = $region12
      $region11: #{harmonic_bond_energy.1} parent=5 // pred_region
        %s130 = ssub.s32 %s12, 1
      $region12: #{harmonic_bond_energy.1} parent=5 // pred_fallthru
        _
      %p131 = scmp.lt.s32.totalorder %s12, 3
      // Predicated region
      $region13: #{harmonic_bond_energy.1} parent=5 // pred_check
        %p132 = pneg %p131
      $region14: #{harmonic_bond_energy.1} parent=5 // pred_check_branch
        %134 = sbr.rel (%p132) target = $region16
      $region15: #{harmonic_bond_energy.1} parent=5 // pred_region
        // Predicated region
        $region17: #{harmonic_bond_energy.1} parent=15 // pred_check
          %p135 = pneg %p32
        $region18: #{harmonic_bond_energy.1} parent=15 // pred_check_branch
          %137 = sbr.rel (%p135) target = $region20
        $region19: #{harmonic_bond_energy.1} parent=15 // pred_region
          %s138 = smul.u32 2, %s12
          %p139 = scmp.lt.s32.totalorder %s138, 5
          %s140 = scalar_select %p139, %s138, 5
          %s141 = smul.addr %s140, 8
          %s142 = scalar_lea.vmem %s0, %s141
          %s143 = smul.u32 2, %s12
        $region20: #{harmonic_bond_energy.1} parent=15 // pred_fallthru
          _
        // Predicated region
        $region21: #{harmonic_bond_energy.1} parent=15 // pred_check
          %p144 = pneg %p58
        $region22: #{harmonic_bond_energy.1} parent=15 // pred_check_branch
          %146 = sbr.rel (%p144) target = $region24
        $region23: #{harmonic_bond_energy.1} parent=15 // pred_region
          %s147 = smul.u32 2, %s12
          %p148 = scmp.lt.s32.totalorder %s147, 5
          %s149 = scalar_select %p148, %s147, 5
          %s150 = smul.addr %s149, 8
          %s151 = scalar_lea.vmem %s1, %s150
          %s152 = smul.u32 2, %s12
        $region24: #{harmonic_bond_energy.1} parent=15 // pred_fallthru
          _
        // Predicated region
        $region25: #{harmonic_bond_energy.1} parent=15 // pred_check
          %p153 = pneg %p84
        $region26: #{harmonic_bond_energy.1} parent=15 // pred_check_branch
          %155 = sbr.rel (%p153) target = $region28
        $region27: #{harmonic_bond_energy.1} parent=15 // pred_region
          %s156 = smul.u32 2, %s12
          %p157 = scmp.lt.s32.totalorder %s156, 5
          %s158 = scalar_select %p157, %s156, 5
          %s159 = smul.addr %s158, 8
          %s160 = scalar_lea.vmem %s2, %s159
          %s161 = smul.u32 2, %s12
        $region28: #{harmonic_bond_energy.1} parent=15 // pred_fallthru
          _
      $region16: #{harmonic_bond_energy.1} parent=5 // pred_fallthru
        _
      %p162 = scmp.le.s32.totalorder 1, %s12
      %p163 = scmp.lt.s32.totalorder %s12, 4
      %p164 = pnand %p162, %p163
      %p165 = pneg %p164
      // Predicated region
      $region29: #{harmonic_bond_energy.1} parent=5 // pred_check
        _
      $region30: #{harmonic_bond_energy.1} parent=5 // pred_check_branch
        %167 = sbr.rel (%p164) target = $region32
      $region31: #{harmonic_bond_energy.1} parent=5 // pred_region
        %s168 = ssub.s32 %s12, 1
        %s169 = smul.u32 2, %s17
        %p170 = scmp.lt.s32.totalorder %s169, 5
        %s171 = scalar_select %p170, %s169, 5
        %s172 = smul.addr %s171, 8
        %s173 = scalar_lea.vmem %s0, %s172
        %p174 = pneg %p38
        %p175 = pneg %p35
        %s176 = smul.u32 2, %s17
        %p177 = scmp.lt.s32.totalorder %s176, 5
        %s178 = scalar_select %p177, %s176, 5
        %s179 = smul.addr %s178, 8
        %s180 = scalar_lea.vmem %s1, %s179
        %p181 = pneg %p64
        %p182 = pneg %p61
        %s183 = smul.u32 2, %s17
        %p184 = scmp.lt.s32.totalorder %s183, 5
        %s185 = scalar_select %p184, %s183, 5
        %s186 = smul.addr %s185, 8
        %s187 = scalar_lea.vmem %s2, %s186
        %p188 = pneg %p90
        %p189 = pneg %p87
        %p190 = pneg %p116
        %p191 = pneg %p113
        %s192 = sand.u32 %s103, 1
        %s193 = scalar_lea.sflag [#allocation3], %s192
        %s194 = sand.u32 %s103, 1
        %s195 = smul.addr %s194, 16
        %s196 = scalar_lea.vmem [#allocation2], %s195
        %s197 = smul.u32 2, %s17
        %p198 = scmp.lt.s32.totalorder %s197, 5
        %s199 = scalar_select %p198, %s197, 5
        %s200 = smul.addr %s199, 8
        %s201 = scalar_lea.vmem %s0, %s200
        %s202 = smul.u32 2, %s17
        %s203 = smul.u32 2, %s17
        %p204 = scmp.lt.s32.totalorder %s203, 5
        %s205 = scalar_select %p204, %s203, 5
        %s206 = smul.addr %s205, 8
        %s207 = scalar_lea.vmem %s1, %s206
        %s208 = smul.u32 2, %s17
        %s209 = smul.u32 2, %s17
        %p210 = scmp.lt.s32.totalorder %s209, 5
        %s211 = scalar_select %p210, %s209, 5
        %s212 = smul.addr %s211, 8
        %s213 = scalar_lea.vmem %s2, %s212
        %s214 = smul.u32 2, %s17
        %s215 = smul.u32 2, %s17
        %v216 = vld [vmem:[%s213] sm:$0xff]
        %v217 = vld [vmem:[%s213 + $0x8] sm:$0xff]
        %v218 = vld [vmem:[%s207] sm:$0xff]
        %v219 = vld [vmem:[%s207 + $0x8] sm:$0xff]
        %v220 = vsub.f32 %v216, %v218
        %v221 = vsub.f32 %v217, %v219
        %v222 = vld [vmem:[%s201] sm:$0xff]
        %v223 = vld [vmem:[%s201 + $0x8] sm:$0xff]
        %v224 = vmul.f32 %v222, 0.5
        %v225 = vmul.f32 %v223, 0.5
        %v226 = vmul.f32 %v224, %v220
        %v227 = vmul.f32 %v225, %v221
        %v228 = vmul.f32 %v226, %v220
        %v229 = vmul.f32 %v227, %v221
        %230 = vst [vmem:[%s196] sm:$0xff] %v228
        %231 = vst [vmem:[%s196 + $0x8] sm:$0xff] %v229
        %s232 = sand.u32 %s103, 1
        %s233 = scalar_lea.sflag [#allocation3], %s232
        %s234 = sand.u32 %s103, 1
        %s235 = smul.addr %s234, 16
        %s236 = scalar_lea.vmem [#allocation2], %s235
        // Predicated region
        $region33: #{harmonic_bond_energy.1} parent=31 // pred_check
          %p237 = pneg %p113
        $region34: #{harmonic_bond_energy.1} parent=31 // pred_check_branch
          %239 = sbr.rel (%p237) target = $region36
        $region35: #{harmonic_bond_energy.1} parent=31 // pred_region
          %s240 = smul.u32 2, %s17
          %242 = vsyncadd %s233, 0
          %s243 = smul.addr %s240, 8
          %s244 = scalar_lea.hbm %s3, %s243
          %s245 = sshll.u32 %s236, 4
          %s246 = int_to_ptr.vmem [resolvable:$true] %s245
          %s247 = sshll.u32 %s244, 4
          %s248 = int_to_ptr.hbm [resolvable:$true] %s247
          %253 = dma.vmem_to_hbm [thread:$0]  %s246, 256, %s248, %s233, 128, 128, 8
        $region36: #{harmonic_bond_energy.1} parent=31 // pred_fallthru
          _
      $region32: #{harmonic_bond_energy.1} parent=5 // pred_fallthru
        _
      %p254 = scmp.le.s32.totalorder 2, %s12
      // Predicated region
      $region37: #{harmonic_bond_energy.1} parent=5 // pred_check
        %p255 = pneg %p254
      $region38: #{harmonic_bond_energy.1} parent=5 // pred_check_branch
        %257 = sbr.rel (%p255) target = $region40
      $region39: #{harmonic_bond_energy.1} parent=5 // pred_region
        %s258 = ssub.s32 %s12, 2
        // Predicated region
        $region41: #{harmonic_bond_energy.1} parent=39 // pred_check
          %p259 = pneg %p119
        $region42: #{harmonic_bond_energy.1} parent=39 // pred_check_branch
          %261 = sbr.rel (%p259) target = $region44
        $region43: #{harmonic_bond_energy.1} parent=39 // pred_region
          %s262 = sand.u32 %s104, 1
          %s263 = scalar_lea.sflag [#allocation3], %s262
          %s264 = sand.u32 %s104, 1
          %s265 = smul.addr %s264, 16
          %s266 = scalar_lea.vmem [#allocation2], %s265
          %268 = dma.done %s263, 256
        $region44: #{harmonic_bond_energy.1} parent=39 // pred_fallthru
          _
      $region40: #{harmonic_bond_energy.1} parent=5 // pred_fallthru
        _
    $region6: #{harmonic_bond_energy.1} parent=1 // loop_footer
      %s16 = sadd.s32 1, %s12
    $region7: #{harmonic_bond_energy.1} parent=1 // loop_footer_branch
      %11 = sbr.rel target = $region3
    $region8: #{harmonic_bond_energy.1} parent=1 // loop_exit
      _
    %269 = vsyncpa [#allocation3], 1
    %s270 = scalar_lea.sflag [#allocation3], 1
    %271 = vsyncpa %s270, 1

</llo_original>
